<compile_context>
chip_gen: v5e
topology: v5e:2x2
jax: 0.10.0
libtpu: 0.0.40
codegen_flags: <defaults>
</compile_context>

<pallas_src>
import jax
import jax.numpy as jnp
from jax.experimental import pallas as pl
from jax.experimental.pallas import tpu as pltpu


def gray_kernel(w_ref, x_ref, o_ref):
    # w_ref: SMEM (3,) scalar weights
    # x_ref: VMEM (NB, 3, T) tile (NB batch elems, 3 channels, T lane-dense pixels)
    # o_ref: VMEM (NB, 1, T)
    w0 = w_ref[0]
    w1 = w_ref[1]
    w2 = w_ref[2]
    o_ref[:, 0, :] = (w0 * x_ref[:, 0, :]
                      + (w1 * x_ref[:, 1, :] + w2 * x_ref[:, 2, :]))


def simple_gray(x, gray_w, *, max_tile_elems=256 * 1024):
    """x: (N, 3, H, W) float32, gray_w: (3,) float32 -> (N, 1, H, W)."""
    N, C, H, W = x.shape
    assert C == 3, "SimpleGray expects 3 input channels"
    HW = H * W

    # Flatten spatial dims into the lane axis (free view for contiguous NCHW).
    xf = x.reshape(N, C, HW)

    # Spatial tiling: n_tiles tiles of T lanes each, T a multiple of 128.
    n_tiles = max(1, (HW + max_tile_elems - 1) // max_tile_elems)
    T = ((HW + n_tiles - 1) // n_tiles + 127) // 128 * 128
    HW_pad = n_tiles * T
    if HW_pad != HW:
        xf = jnp.pad(xf, ((0, 0), (0, 0), (0, HW_pad - HW)))

    # Batch blocking: for small images, process several batch elements per
    # step so each tile carries ~max_tile_elems lanes of input per channel.
    NB = max(1, max_tile_elems // T)
    NB = min(NB, N)
    while N % NB:
        NB -= 1

    grid = (N // NB, n_tiles)

    out = pl.pallas_call(
        gray_kernel,
        out_shape=jax.ShapeDtypeStruct((N, 1, HW_pad), x.dtype),
        grid=grid,
        in_specs=[
            pl.BlockSpec(memory_space=pltpu.SMEM),                 # weights
            pl.BlockSpec((NB, C, T), lambda b, s: (b, 0, s)),      # input tile
        ],
        out_specs=pl.BlockSpec((NB, 1, T), lambda b, s: (b, 0, s)),
        compiler_params=pltpu.CompilerParams(
            dimension_semantics=("parallel", "parallel")),
        cost_estimate=pl.CostEstimate(
            flops=5 * N * HW,            # 3 mul + 2 add per pixel
            bytes_accessed=16 * N * HW,  # 3 ch in + 1 ch out, f32
            transcendentals=0),
    )(gray_w, xf)

    if HW_pad != HW:
        out = out[:, :, :HW]
    return out.reshape(N, 1, H, W)


if __name__ == "__main__":
    # Deterministic parameter setup (matches the registered buffer in __init__).
    gray_w = jnp.array([0.2989, 0.587, 0.114], dtype=jnp.float32)

    key = jax.random.PRNGKey(0)

    # Small NCHW input consistent with the module (3 channels required).
    x = jax.random.normal(key, (2, 3, 16, 16), dtype=jnp.float32)
    out = simple_gray(x, gray_w)
    out = jax.block_until_ready(out)

    ref = jnp.einsum('nchw,c->nhw', x, gray_w)[:, None, :, :]
    assert out.shape == (2, 1, 16, 16)
    assert jnp.allclose(out, ref, atol=1e-5, rtol=1e-5)

    # Extra check: spatial extent not a multiple of 128 (exercises padding path).
    x2 = jax.random.normal(jax.random.PRNGKey(1), (2, 3, 7, 9), dtype=jnp.float32)
    out2 = jax.block_until_ready(simple_gray(x2, gray_w))
    ref2 = jnp.einsum('nchw,c->nhw', x2, gray_w)[:, None, :, :]
    assert out2.shape == (2, 1, 7, 9)
    assert jnp.allclose(out2, ref2, atol=1e-5, rtol=1e-5)

    print("KERNEL_OK")
</pallas_src>

<mosaic_0001>
module attributes {stable_mosaic.version = 11 : i64} {
  func.func @gray_kernel(%arg0: i32, %arg1: i32, %arg2: memref<3xf32, #tpu.memory_space<smem>>, %arg3: memref<2x3x256xf32, #tpu.memory_space<vmem>>, %arg4: memref<2x1x256xf32, #tpu.memory_space<vmem>>) attributes {dimension_semantics = [#tpu.dimension_semantics<parallel>, #tpu.dimension_semantics<parallel>], iteration_bounds = array<i64: 1, 1>, scalar_prefetch = 0 : i64, scratch_operands = 0 : i64, tpu.core_type = #tpu.core_type<tc>, window_params = [{transform_indices = @transform_0, window_bounds = array<i64: 3>}, {transform_indices = @transform_1, window_bounds = array<i64: 2, 3, 256>}, {transform_indices = @transform_2, window_bounds = array<i64: 2, 1, 256>}]} {
    %c0 = arith.constant 0 : index
    %0 = memref.load %arg2[%c0] : memref<3xf32, #tpu.memory_space<smem>>
    %c1 = arith.constant 1 : index
    %1 = memref.load %arg2[%c1] : memref<3xf32, #tpu.memory_space<smem>>
    %c2 = arith.constant 2 : index
    %2 = memref.load %arg2[%c2] : memref<3xf32, #tpu.memory_space<smem>>
    %c0_0 = arith.constant 0 : index
    %c0_1 = arith.constant 0 : index
    %c0_2 = arith.constant 0 : index
    %3 = vector.load %arg3[%c0_0, %c0_1, %c0_2] : memref<2x3x256xf32, #tpu.memory_space<vmem>>, vector<2x1x256xf32>
    %4 = vector.shape_cast %3 : vector<2x1x256xf32> to vector<2x256xf32>
    %5 = vector.broadcast %0 : f32 to vector<2x256xf32>
    %6 = arith.mulf %5, %4 : vector<2x256xf32>
    %c0_3 = arith.constant 0 : index
    %c1_4 = arith.constant 1 : index
    %c0_5 = arith.constant 0 : index
    %7 = vector.load %arg3[%c0_3, %c1_4, %c0_5] : memref<2x3x256xf32, #tpu.memory_space<vmem>>, vector<2x1x256xf32>
    %8 = vector.shape_cast %7 : vector<2x1x256xf32> to vector<2x256xf32>
    %9 = vector.broadcast %1 : f32 to vector<2x256xf32>
    %10 = arith.mulf %9, %8 : vector<2x256xf32>
    %c0_6 = arith.constant 0 : index
    %c2_7 = arith.constant 2 : index
    %c0_8 = arith.constant 0 : index
    %11 = vector.load %arg3[%c0_6, %c2_7, %c0_8] : memref<2x3x256xf32, #tpu.memory_space<vmem>>, vector<2x1x256xf32>
    %12 = vector.shape_cast %11 : vector<2x1x256xf32> to vector<2x256xf32>
    %13 = vector.broadcast %2 : f32 to vector<2x256xf32>
    %14 = arith.mulf %13, %12 : vector<2x256xf32>
    %15 = arith.addf %10, %14 : vector<2x256xf32>
    %16 = arith.addf %6, %15 : vector<2x256xf32>
    %c0_9 = arith.constant 0 : index
    %c0_10 = arith.constant 0 : index
    %c0_11 = arith.constant 0 : index
    %17 = vector.load %arg4[%c0_9, %c0_10, %c0_11] : memref<2x1x256xf32, #tpu.memory_space<vmem>>, vector<2x1x256xf32>
    %18 = vector.shape_cast %17 : vector<2x1x256xf32> to vector<2x256xf32>
    %19 = vector.shape_cast %16 : vector<2x256xf32> to vector<2x1x256xf32>
    tpu.vector_store %arg4[%c0_9, %c0_10, %c0_11], %19 {strides = array<i32>} : memref<2x1x256xf32, #tpu.memory_space<vmem>>, vector<2x1x256xf32>,
    return
  }
  func.func @transform_0(%arg0: i32, %arg1: i32) -> i32 {
    %c0_i32 = arith.constant 0 : i32
    %c0_i32_0 = arith.constant 0 : i32
    return %c0_i32 : i32
  }
  func.func @transform_1(%arg0: i32, %arg1: i32) -> (i32, i32, i32) {
    %c0_i32 = arith.constant 0 : i32
    %c0_i32_0 = arith.constant 0 : i32
    return %arg0, %c0_i32, %arg1 : i32, i32, i32
  }
  func.func @transform_2(%arg0: i32, %arg1: i32) -> (i32, i32, i32) {
    %c0_i32 = arith.constant 0 : i32
    %c0_i32_0 = arith.constant 0 : i32
    return %arg0, %c0_i32, %arg1 : i32, i32, i32
  }
}

</mosaic_0001>

<llo_original>
// kernel: tpu_custom_call.1
$region0: #{tpu_custom_call.1}
  #allocation0 [shape = 'u32[]', space=smem, size = 0x4, offset = 0x4, fixed_abs, tag = 'smem constant byte address 0x4 - core index']
  #allocation1 [shape = 'u32[72,128]{1,0:T(1,128)}', space=vmem, size = 0x9000, scoped, tag = 'internal scratch']
  %s0 = inlined_call_operand.vmem [shape: f32[3], index: 0, kind: input, shape index: {}]
  %s1 = inlined_call_operand.vmem [shape: f32[2,3,256], index: 1, kind: input, shape index: {}]
  %s2 = inlined_call_operand.hbm [shape: f32[2,1,256], index: 2, kind: output, shape index: {}]
  %s3 = sld [smem:[#allocation0]]
  $region22: #{tpu_custom_call.1} parent=0
    _
  %s5 = ssub.s32 1, %s3
  %s6 = scalar_select 0, %s5, %s3
  $region1: #{tpu_custom_call.1} parent=0
    #allocation2 [shape = 'u8[512]{0}', space=smem, size = 0x200, scoped, tag = 'input window, operand 0, single buffered']
    #allocation3 [shape = 's32[1]{0}', space=sflag, size = 0x4, scoped, tag = 'scoped memory for tpu_custom_call.1']
    #allocation4 [shape = 's32[1]{0}', space=sflag, size = 0x4, scoped, tag = 'scoped memory for tpu_custom_call.1']
    #allocation5 [shape = 'u8[2048]{0}', space=vmem, size = 0x800, scoped, tag = 'output window, operand 0, single buffered']
    %7 = vsyncpa [#allocation4], 0
    %8 = vsyncpa [#allocation3], 0
    // Predicated region
    $region2: #{tpu_custom_call.1} parent=1 // pred_check
      _
    $region3: #{tpu_custom_call.1} parent=1 // pred_check_branch
      %10 = sbr.rel (0) target = $region5
    $region4: #{tpu_custom_call.1} parent=1 // pred_region
      %12 = vsyncadd [#allocation4], 0
      %s14 = sshll.u32 %s0, 4
      %s15 = int_to_ptr.vmem [resolvable:$true] %s14
      %17 = dma.vmem_to_smem %s15, 16, [#allocation2], [#allocation4]
    $region5: #{tpu_custom_call.1} parent=1 // pred_fallthru
      _
    // Predicated region
    $region6: #{tpu_custom_call.1} parent=1 // pred_check
      _
    $region7: #{tpu_custom_call.1} parent=1 // pred_check_branch
      %19 = sbr.rel (0) target = $region9
    $region8: #{tpu_custom_call.1} parent=1 // pred_region
      _
    $region9: #{tpu_custom_call.1} parent=1 // pred_fallthru
      _
    // Predicated region
    $region10: #{tpu_custom_call.1} parent=1 // pred_check
      _
    $region11: #{tpu_custom_call.1} parent=1 // pred_check_branch
      %21 = sbr.rel (0) target = $region13
    $region12: #{tpu_custom_call.1} parent=1 // pred_region
      %23 = dma.done [#allocation4], 16
    $region13: #{tpu_custom_call.1} parent=1 // pred_fallthru
      _
    %24 = sfence
    %s25 = sld [smem:[#allocation2]]
    %s26 = sld [smem:[#allocation2 + $0x1]]
    %s27 = sld [smem:[#allocation2 + $0x2]]
    %v28 = vld [vmem:[%s1] ss:$4 sm:$0x3]
    %s29 = scalar_lea.vmem %s1, 8
    %v30 = vld [vmem:[%s29] ss:$4 sm:$0x3]
    %v31 = vstv %s25
    %v32 = vmul.f32 %v31, %v28
    %v33 = vmul.f32 %v31, %v30
    %s34 = scalar_lea.vmem %s1, 1
    %v35 = vld [vmem:[%s34] ss:$4 sm:$0x3]
    %s36 = scalar_lea.vmem %s1, 9
    %v37 = vld [vmem:[%s36] ss:$4 sm:$0x3]
    %v38 = vstv %s26
    %v39 = vmul.f32 %v38, %v35
    %v40 = vmul.f32 %v38, %v37
    %s41 = scalar_lea.vmem %s1, 2
    %v42 = vld [vmem:[%s41] ss:$4 sm:$0x3]
    %s43 = scalar_lea.vmem %s1, 10
    %v44 = vld [vmem:[%s43] ss:$4 sm:$0x3]
    %v45 = vstv %s27
    %v46 = vmul.f32 %v45, %v42
    %v47 = vmul.f32 %v45, %v44
    %v48 = vadd.f32 %v39, %v46
    %v49 = vadd.f32 %v40, %v47
    %v50 = vadd.f32 %v32, %v48
    %v51 = vadd.f32 %v33, %v49
    %v52 = vlaneseq
    %vm53 = vcmp.ge.s32.totalorder %v52, 0
    %vm54 = vcmp.lt.s32.totalorder %v52, 256
    %vm55 = vmand %vm53, %vm54
    %56 = vst.msk [vmem:[#allocation5] sm:$0x3] %vm55, %v50
    %57 = vst.msk [vmem:[#allocation5 + $0x2] sm:$0x3] %vm55, %v51
    // Predicated region
    $region14: #{tpu_custom_call.1} parent=1 // pred_check
      _
    $region15: #{tpu_custom_call.1} parent=1 // pred_check_branch
      %59 = sbr.rel (0) target = $region17
    $region16: #{tpu_custom_call.1} parent=1 // pred_region
      %61 = vsyncadd [#allocation3], 0
      %s62 = sshll.u32 [#allocation5], 4
      %s63 = int_to_ptr.vmem [resolvable:$true] %s62
      %s64 = sshll.u32 %s2, 4
      %s65 = int_to_ptr.hbm [resolvable:$true] %s64
      %70 = dma.vmem_to_hbm [thread:$0]  %s63, 64, %s65, [#allocation3], 32, 32, 2
    $region17: #{tpu_custom_call.1} parent=1 // pred_fallthru
      _
    // Predicated region
    $region18: #{tpu_custom_call.1} parent=1 // pred_check
      _
    $region19: #{tpu_custom_call.1} parent=1 // pred_check_branch
      %72 = sbr.rel (0) target = $region21
    $region20: #{tpu_custom_call.1} parent=1 // pred_region
      %74 = dma.done [#allocation3], 64
    $region21: #{tpu_custom_call.1} parent=1 // pred_fallthru
      _
    %75 = vsyncpa [#allocation3], 1
    %76 = vsyncpa [#allocation4], 1

</llo_original>
